<compile_context>
chip_gen: v7x
topology: tpu7x:2x2x1
jax: 0.10.0
libtpu: 0.0.40
codegen_flags: <defaults>
</compile_context>

<pallas_src>
import math

import jax
import jax.numpy as jnp
from jax.experimental import pallas as pl
from jax.experimental.pallas import tpu as pltpu


def _rbf_softmax_kernel(x_ref, w_ref, b_ref, probs_ref, logp_ref):
    # x_ref:  (tm, D) row tile of flattened feature_in (native dtype)
    # w_ref:  (K, D)  full RBF centers (native dtype, resident across the grid)
    # b_ref:  (K, 1)  = -0.5 * ||w_k||^2, precomputed f32
    # probs_ref / logp_ref: (tm, K) output tiles (module layout; contiguous HBM)

    # logits^T[k, m] = w_k . x_m - 0.5*||w_k||^2
    #   (-0.5*||x_m||^2 is a per-column constant -> cancels in softmax/log_softmax.)
    # Contract the minor dim of both operands (preferred MXU form, no vxpose of
    # the big (tm, D) tile); bf16-in / f32-accumulate is the native MXU path.
    xw = jax.lax.dot_general(
        w_ref[...], x_ref[...], (((1,), (1,)), ((), ())),
        preferred_element_type=jnp.float32)              # (K, tm) f32, lane-dense
    logits = xw + b_ref[...]                             # (K,1) broadcast over lanes

    # Numerically stable softmax / log_softmax over the K axis (axis 0 of the
    # transposed tile); single exp on fully packed vregs.
    m = jnp.max(logits, axis=0, keepdims=True)           # (1, tm)
    shifted = logits - m
    p = jnp.exp(shifted)                                 # (K, tm) -- EUP once
    s = jnp.sum(p, axis=0, keepdims=True)                # (1, tm)
    inv_s = 1.0 / s                                      # exact (keeps 1e-4 parity)
    probs_t = p * inv_s                                  # (K, tm)
    logp_t = shifted - jnp.log(s)                        # (K, tm)

    # In-kernel transpose (XLU slot, otherwise idle) so the kernel writes the
    # module's (M, K) layout directly -- no second HBM pass in the wrapper.
    probs_ref[...] = probs_t.T.astype(probs_ref.dtype)
    logp_ref[...] = logp_t.T.astype(logp_ref.dtype)


def rbf_softmax(feature_in, feature_weight, *, tm=4096):
    """Pallas implementation of RbfSoftmax.forward(feature_in, feature_weight).

    tm: max row-tile size (multiple of 128). Default 4096 fits all generations'
        VMEM with the lane-padded D=32 / K=16 blocks; v6e can afford 8192.
    """
    *lead, D = feature_in.shape
    K, Dw = feature_weight.shape
    assert D == Dw, "feature dim mismatch"

    M = int(math.prod(lead)) if lead else 1
    x = feature_in.reshape(M, D)
    out_dtype = feature_in.dtype
    itemsize = jnp.dtype(out_dtype).itemsize

    # Hoist the weight-norm bias out of the kernel (computed once, f32).
    bias = (-0.5 * jnp.sum(feature_weight.astype(jnp.float32) ** 2,
                           axis=-1)).reshape(K, 1)

    # --- Tile selection ---------------------------------------------------
    # Tiny M: one full-array block (block == full dim is always legal).
    # Otherwise: multiple of 128, capped at tm, and sized so the grid has at
    # least 2 steps (feeds both v7x TensorCores); Pallas masks the ragged edge.
    if M <= 256:
        tm_eff = M
    else:
        tm_eff = min(int(tm), 128 * int(pl.cdiv(M, 2 * 128)))
        tm_eff = max(tm_eff, 128)
    grid = (int(pl.cdiv(M, tm_eff)),)

    # --- VMEM budget (lane padding matters: D=32 and K=16 pad to 128 lanes) ---
    def _padded_bytes(rows, cols):
        return (-(-rows // 8) * 8) * (-(-cols // 128) * 128) * itemsize

    block_bytes = _padded_bytes(tm_eff, D) + 2 * _padded_bytes(tm_eff, K)
    # 2x for double buffering plus headroom for in-kernel f32 intermediates.
    vmem_limit = int(min(48 << 20, max(32 << 20, 4 * block_bytes)))

    cost = pl.CostEstimate(
        flops=2 * M * K * D + 6 * M * K,
        transcendentals=M * K + M,
        bytes_accessed=M * D * itemsize + K * D * itemsize + 2 * M * K * itemsize,
    )

    probs, logp = pl.pallas_call(
        _rbf_softmax_kernel,
        out_shape=(
            jax.ShapeDtypeStruct((M, K), out_dtype),
            jax.ShapeDtypeStruct((M, K), out_dtype),
        ),
        grid_spec=pltpu.PrefetchScalarGridSpec(
            num_scalar_prefetch=0,
            grid=grid,
            in_specs=[
                pl.BlockSpec((tm_eff, D), lambda i: (i, 0)),   # x row tile
                pl.BlockSpec((K, D), lambda i: (0, 0)),        # full weights
                pl.BlockSpec((K, 1), lambda i: (0, 0)),        # -0.5*||w||^2
            ],
            out_specs=[
                pl.BlockSpec((tm_eff, K), lambda i: (i, 0)),   # probs (M, K)
                pl.BlockSpec((tm_eff, K), lambda i: (i, 0)),   # logp  (M, K)
            ],
        ),
        compiler_params=pltpu.CompilerParams(
            dimension_semantics=("parallel",),
            vmem_limit_bytes=vmem_limit,
        ),
        cost_estimate=cost,
    )(x, feature_weight, bias)

    # Pure metadata reshape back to the module's (..., K) layout (no data movement).
    return probs.reshape(*lead, K), logp.reshape(*lead, K)


def rbf_softmax_reference(feature_in, feature_weight):
    """Pure-JAX transcription of the PyTorch forward (for verification)."""
    ndim = feature_in.ndim
    fi = jnp.expand_dims(feature_in, ndim - 1)          # (..., 1, D)
    fw = feature_weight
    for _ in range(ndim - 1):
        fw = jnp.expand_dims(fw, 0)                     # (1, ..., K, D)
    logits = -0.5 * (fi - fw) ** 2
    logits = logits.sum(-1)                             # (..., K)
    logp = jax.nn.log_softmax(logits, axis=-1)
    probs = jax.nn.softmax(logp, axis=-1)
    return probs, logp


if __name__ == "__main__":
    key = jax.random.PRNGKey(0)
    k_in, k_w, k_in2 = jax.random.split(key, 3)

    # Small shapes consistent with the module's forward.
    B, N, D, K = 2, 8, 32, 16
    feature_in = jax.random.normal(k_in, (B, N, D), dtype=jnp.float32)
    # Deterministic "parameter" init for the RBF centers (module has no params).
    feature_weight = jax.random.normal(k_w, (K, D), dtype=jnp.float32) * 0.5

    probs, logp = rbf_softmax(feature_in, feature_weight)
    probs = jax.block_until_ready(probs)
    logp = jax.block_until_ready(logp)

    probs_ref, logp_ref = rbf_softmax_reference(feature_in, feature_weight)
    assert probs.shape == (B, N, K) and logp.shape == (B, N, K)
    assert jnp.allclose(probs, probs_ref, atol=1e-4, rtol=1e-4)
    assert jnp.allclose(logp, logp_ref, atol=1e-4, rtol=1e-4)

    # Second case: multiple grid steps + ragged (masked) edge block.
    B2, N2 = 3, 150                       # M = 450 -> 4 tiles of 128, last partial
    feature_in2 = jax.random.normal(k_in2, (B2, N2, D), dtype=jnp.float32)
    probs2, logp2 = rbf_softmax(feature_in2, feature_weight, tm=128)
    probs2 = jax.block_until_ready(probs2)
    logp2 = jax.block_until_ready(logp2)
    probs2_ref, logp2_ref = rbf_softmax_reference(feature_in2, feature_weight)
    assert probs2.shape == (B2, N2, K) and logp2.shape == (B2, N2, K)
    assert jnp.allclose(probs2, probs2_ref, atol=1e-4, rtol=1e-4)
    assert jnp.allclose(logp2, logp2_ref, atol=1e-4, rtol=1e-4)

    print("KERNEL_OK")
</pallas_src>

<mosaic_0001>
module attributes {stable_mosaic.version = 11 : i64} {
  func.func @_rbf_softmax_kernel(%arg0: i32, %arg1: memref<16x32xf32, #tpu.memory_space<vmem>>, %arg2: memref<16x32xf32, #tpu.memory_space<vmem>>, %arg3: memref<16x1xf32, #tpu.memory_space<vmem>>, %arg4: memref<16x16xf32, #tpu.memory_space<vmem>>, %arg5: memref<16x16xf32, #tpu.memory_space<vmem>>) attributes {dimension_semantics = [#tpu.dimension_semantics<parallel>], iteration_bounds = array<i64: 1>, scalar_prefetch = 0 : i64, scratch_operands = 0 : i64, tpu.core_type = #tpu.core_type<tc>, window_params = [{transform_indices = @transform_0, window_bounds = array<i64: 16, 32>}, {pipeline_mode = #tpu.pipeline_mode<synchronous>, transform_indices = @transform_1, window_bounds = array<i64: 16, 32>}, {pipeline_mode = #tpu.pipeline_mode<synchronous>, transform_indices = @transform_2, window_bounds = array<i64: 16, 1>}, {transform_indices = @transform_3, window_bounds = array<i64: 16, 16>}, {transform_indices = @transform_4, window_bounds = array<i64: 16, 16>}]} {
    %c0 = arith.constant 0 : index
    %c0_0 = arith.constant 0 : index
    %0 = vector.load %arg2[%c0, %c0_0] : memref<16x32xf32, #tpu.memory_space<vmem>>, vector<16x32xf32>
    %c0_1 = arith.constant 0 : index
    %c0_2 = arith.constant 0 : index
    %1 = vector.load %arg1[%c0_1, %c0_2] : memref<16x32xf32, #tpu.memory_space<vmem>>, vector<16x32xf32>
    %cst = arith.constant dense<0.000000e+00> : vector<16x16xf32>
    %2 = tpu.matmul %0, %1, %cst {dimension_numbers = #tpu.dot_dimension_numbers<[1], [1], [0], [0], [0, 0, 1, 0], [], []>} : vector<16x32xf32>, vector<16x32xf32>, vector<16x16xf32> -> vector<16x16xf32>
    %c0_3 = arith.constant 0 : index
    %c0_4 = arith.constant 0 : index
    %3 = vector.load %arg3[%c0_3, %c0_4] : memref<16x1xf32, #tpu.memory_space<vmem>>, vector<16x1xf32>
    %4 = vector.broadcast %3 : vector<16x1xf32> to vector<16x16xf32>
    %5 = arith.addf %2, %4 : vector<16x16xf32>
    %cst_5 = arith.constant dense<0xFF800000> : vector<16xf32>
    %6 = vector.multi_reduction <maximumf>, %5, %cst_5 [0] : vector<16x16xf32> to vector<16xf32>
    %7 = vector.shape_cast %6 : vector<16xf32> to vector<1x16xf32>
    %8 = vector.broadcast %7 : vector<1x16xf32> to vector<16x16xf32>
    %9 = arith.subf %5, %8 : vector<16x16xf32>
    %10 = math.exp %9 : vector<16x16xf32>
    %cst_6 = arith.constant dense<0.000000e+00> : vector<16xf32>
    %11 = vector.multi_reduction <add>, %10, %cst_6 [0] : vector<16x16xf32> to vector<16xf32>
    %12 = vector.shape_cast %11 : vector<16xf32> to vector<1x16xf32>
    %cst_7 = arith.constant 1.000000e+00 : f32
    %13 = vector.broadcast %cst_7 : f32 to vector<1x16xf32>
    %14 = arith.divf %13, %12 : vector<1x16xf32>
    %15 = vector.broadcast %14 : vector<1x16xf32> to vector<16x16xf32>
    %16 = arith.mulf %10, %15 : vector<16x16xf32>
    %17 = math.log %12 : vector<1x16xf32>
    %18 = vector.broadcast %17 : vector<1x16xf32> to vector<16x16xf32>
    %19 = arith.subf %9, %18 : vector<16x16xf32>
    %20 = tpu.transpose %16, [1, 0] : vector<16x16xf32> -> vector<16x16xf32>
    %c0_8 = arith.constant 0 : index
    %c0_9 = arith.constant 0 : index
    %21 = vector.load %arg4[%c0_8, %c0_9] : memref<16x16xf32, #tpu.memory_space<vmem>>, vector<16x16xf32>
    tpu.vector_store %arg4[%c0_8, %c0_9], %20 {strides = array<i32>} : memref<16x16xf32, #tpu.memory_space<vmem>>, vector<16x16xf32>,
    %22 = tpu.transpose %19, [1, 0] : vector<16x16xf32> -> vector<16x16xf32>
    %c0_10 = arith.constant 0 : index
    %c0_11 = arith.constant 0 : index
    %23 = vector.load %arg5[%c0_10, %c0_11] : memref<16x16xf32, #tpu.memory_space<vmem>>, vector<16x16xf32>
    tpu.vector_store %arg5[%c0_10, %c0_11], %22 {strides = array<i32>} : memref<16x16xf32, #tpu.memory_space<vmem>>, vector<16x16xf32>,
    return
  }
  func.func @transform_0(%arg0: i32) -> (i32, i32) {
    %c0_i32 = arith.constant 0 : i32
    %c0_i32_0 = arith.constant 0 : i32
    return %arg0, %c0_i32 : i32, i32
  }
  func.func @transform_1(%arg0: i32) -> (i32, i32) {
    %c0_i32 = arith.constant 0 : i32
    %c0_i32_0 = arith.constant 0 : i32
    %c0_i32_1 = arith.constant 0 : i32
    return %c0_i32, %c0_i32_0 : i32, i32
  }
  func.func @transform_2(%arg0: i32) -> (i32, i32) {
    %c0_i32 = arith.constant 0 : i32
    %c0_i32_0 = arith.constant 0 : i32
    %c0_i32_1 = arith.constant 0 : i32
    return %c0_i32, %c0_i32_0 : i32, i32
  }
  func.func @transform_3(%arg0: i32) -> (i32, i32) {
    %c0_i32 = arith.constant 0 : i32
    %c0_i32_0 = arith.constant 0 : i32
    return %arg0, %c0_i32 : i32, i32
  }
  func.func @transform_4(%arg0: i32) -> (i32, i32) {
    %c0_i32 = arith.constant 0 : i32
    %c0_i32_0 = arith.constant 0 : i32
    return %arg0, %c0_i32 : i32, i32
  }
}

</mosaic_0001>

<llo_original>
// kernel: tpu_custom_call.1
$region0: #{tpu_custom_call.1}
  #allocation0 [shape = 'u32[]', space=smem, size = 0x4, offset = 0x4, fixed_abs, tag = 'smem constant byte address 0x4 - core index']
  #allocation1 [shape = 'u32[144,128]{1,0:T(1,128)}', space=vmem, size = 0x12000, scoped, tag = 'internal scratch']
  %s0 = inlined_call_operand.vmem [shape: f32[16,32], index: 0, kind: input, shape index: {}]
  %s1 = inlined_call_operand.hbm [shape: f32[16,32], index: 1, kind: input, shape index: {}]
  %s2 = inlined_call_operand.vmem [shape: f32[16,1], index: 2, kind: input, shape index: {}]
  %s3 = inlined_call_operand.hbm [shape: f32[16,16], index: 3, kind: output, shape index: {0}]
  %s4 = inlined_call_operand.hbm [shape: f32[16,16], index: 4, kind: output, shape index: {1}]
  %5 = xla_tuple %s3, %s4
  %s6 = sld [smem:[#allocation0]]
  $region34: #{tpu_custom_call.1} parent=0
    _
  %s8 = ssub.s32 1, %s6
  %s9 = scalar_select 0, %s8, %s6
  $region1: #{tpu_custom_call.1} parent=0
    #allocation2 [shape = 'u8[8192]{0}', space=vmem, size = 0x2000, scoped, tag = 'input window, operand 1, single buffered']
    #allocation3 [shape = 's32[1]{0}', space=sflag, size = 0x4, scoped, tag = 'scoped memory for tpu_custom_call.1']
    #allocation4 [shape = 's32[1]{0}', space=sflag, size = 0x4, scoped, tag = 'scoped memory for tpu_custom_call.1']
    #allocation5 [shape = 'u8[8192]{0}', space=vmem, size = 0x2000, scoped, tag = 'output window, operand 0, single buffered']
    #allocation6 [shape = 'u8[8192]{0}', space=vmem, size = 0x2000, scoped, tag = 'output window, operand 1, single buffered']
    #allocation7 [shape = 's32[1]{0}', space=sflag, size = 0x4, scoped, tag = 'scoped memory for tpu_custom_call.1']
    %10 = vsyncpa [#allocation3], 0
    %11 = vsyncpa [#allocation4], 0
    %12 = vsyncpa [#allocation7], 0
    // Predicated region
    $region2: #{tpu_custom_call.1} parent=1 // pred_check
      _
    $region3: #{tpu_custom_call.1} parent=1 // pred_check_branch
      %14 = sbr.rel (0) target = $region5
    $region4: #{tpu_custom_call.1} parent=1 // pred_region
      _
    $region5: #{tpu_custom_call.1} parent=1 // pred_fallthru
      _
    // Predicated region
    $region6: #{tpu_custom_call.1} parent=1 // pred_check
      _
    $region7: #{tpu_custom_call.1} parent=1 // pred_check_branch
      %16 = sbr.rel (0) target = $region9
    $region8: #{tpu_custom_call.1} parent=1 // pred_region
      %s18 = ssub.s32 256, 256
      %19 = vsyncadd [#allocation3], %s18
      %s20 = sshll.u32 [#allocation2], 4
      %s21 = int_to_ptr.vmem [resolvable:$true] %s20
      %26 = dma.hbm_to_vmem [thread:$0]  %s1, 256, %s21, [#allocation3], 128, 128, 8
    $region9: #{tpu_custom_call.1} parent=1 // pred_fallthru
      _
    // Predicated region
    $region10: #{tpu_custom_call.1} parent=1 // pred_check
      _
    $region11: #{tpu_custom_call.1} parent=1 // pred_check_branch
      %28 = sbr.rel (0) target = $region13
    $region12: #{tpu_custom_call.1} parent=1 // pred_region
      _
    $region13: #{tpu_custom_call.1} parent=1 // pred_fallthru
      _
    // Predicated region
    $region14: #{tpu_custom_call.1} parent=1 // pred_check
      _
    $region15: #{tpu_custom_call.1} parent=1 // pred_check_branch
      %30 = sbr.rel (0) target = $region17
    $region16: #{tpu_custom_call.1} parent=1 // pred_region
      %31 = dma.done [#allocation3], 256
    $region17: #{tpu_custom_call.1} parent=1 // pred_fallthru
      _
    %v32 = vld [vmem:[#allocation2] sm:$0xff]
    %v33 = vld [vmem:[#allocation2 + $0x8] sm:$0xff]
    %v34 = vld [vmem:[%s0] sm:$0xff]
    %v35 = vld [vmem:[%s0 + $0x8] sm:$0xff]
    %v36 = vld [vmem:[%s2] sm:$0xff]
    %v37 = vld [vmem:[%s2 + $0x8] sm:$0xff]
    %39 = vset.pattern.permute.xlu0 0
    %40 = vperm.xlu0 %39, %v36
    %v41 = vpop.permute.xlu0 %40
    %44 = vset.pattern.permute.xlu0 0
    %45 = vperm.xlu0 %44, %v37
    %v46 = vpop.permute.xlu0 %45
    %vm48 = vcmask 261120
    %v50 = vsel %vm48, %v32, 0
    %v53 = vsel %vm48, %v33, 0
    %v56 = vsel %vm48, %v34, 0
    %v59 = vsel %vm48, %v35, 0
    %61 = vmatprep.subr.mxu0 0.0
    %62 = vmatpush1.xpose.msra.mxu0 %v56
    %63 = vmatprep.subr.mxu0 0.0
    %64 = vmatpush1.xpose.msra.mxu0 %v59
    %65 = vmatprep.subr.mxu0 0.0
    %66 = vmatpush1.xpose.msra.mxu0 0.0
    %67 = vmatprep.subr.mxu0 0.0
    %68 = vmatpush1.xpose.msra.mxu0 0.0
    %69 = vmatprep.subr.mxu0 0.0
    %70 = vmatpush1.xpose.msra.mxu0 0.0
    %71 = vmatprep.subr.mxu0 0.0
    %72 = vmatpush1.xpose.msra.mxu0 0.0
    %73 = vmatprep.subr.mxu0 0.0
    %74 = vmatpush1.xpose.msra.mxu0 0.0
    %75 = vmatprep.subr.mxu0 0.0
    %76 = vmatpush1.xpose.msra.mxu0 0.0
    %77 = vmatprep.subr.mxu0 0.0
    %78 = vmatpush1.xpose.msra.mxu0 0.0
    %79 = vmatprep.subr.mxu0 0.0
    %80 = vmatpush1.xpose.msra.mxu0 0.0
    %81 = vmatprep.subr.mxu0 0.0
    %82 = vmatpush1.xpose.msra.mxu0 0.0
    %83 = vmatprep.subr.mxu0 0.0
    %84 = vmatpush1.xpose.msra.mxu0 0.0
    %85 = vmatprep.subr.mxu0 0.0
    %86 = vmatpush1.xpose.msra.mxu0 0.0
    %87 = vmatprep.subr.mxu0 0.0
    %88 = vmatpush1.xpose.msra.mxu0 0.0
    %89 = vmatprep.subr.mxu0 0.0
    %90 = vmatpush1.xpose.msra.mxu0 0.0
    %91 = vmatprep.subr.mxu0 0.0
    %92 = vmatpush1.xpose.msra.mxu0 0.0
    %93 = vmatprep.subr.mxu0 0.0
    %94 = vmatpush1.xpose.msra.mxu0 0.0
    %95 = vmatprep.subr.mxu0 0.0
    %96 = vmatpush1.xpose.msra.mxu0 0.0
    %97 = vmatprep.subr.mxu0 0.0
    %98 = vmatpush1.xpose.msra.mxu0 0.0
    %99 = vmatprep.subr.mxu0 0.0
    %100 = vmatpush1.xpose.msra.mxu0 0.0
    %101 = vmatprep.subr.mxu0 0.0
    %102 = vmatpush1.xpose.msra.mxu0 0.0
    %103 = vmatprep.subr.mxu0 0.0
    %104 = vmatpush1.xpose.msra.mxu0 0.0
    %105 = vmatprep.subr.mxu0 0.0
    %106 = vmatpush1.xpose.msra.mxu0 0.0
    %107 = vmatprep.subr.mxu0 0.0
    %108 = vmatpush1.xpose.msra.mxu0 0.0
    %109 = vmatprep.subr.mxu0 0.0
    %110 = vmatpush1.xpose.msra.mxu0 0.0
    %111 = vmatprep.subr.mxu0 0.0
    %112 = vmatpush1.xpose.msra.mxu0 0.0
    %113 = vmatprep.subr.mxu0 0.0
    %114 = vmatpush1.xpose.msra.mxu0 0.0
    %115 = vmatprep.subr.mxu0 0.0
    %116 = vmatpush1.xpose.msra.mxu0 0.0
    %117 = vmatprep.subr.mxu0 0.0
    %118 = vmatpush1.xpose.msra.mxu0 0.0
    %119 = vmatprep.subr.mxu0 0.0
    %120 = vmatpush1.xpose.msra.mxu0 0.0
    %121 = vmatprep.subr.mxu0 0.0
    %122 = vmatpush1.xpose.msra.mxu0 0.0
    %123 = vmatprep.subr.mxu0 0.0
    %124 = vmatpush1.xpose.msra.mxu0 0.0
    %125 = vmatprep.mubr.f32.mxu0 0.0
    %126 = vmatmul.mubr.f32.gmra.mrb[0].mxu0 %v50
    %v127 = vpop.f32.mrb[0].mxu0
    %v128 = vadd.f32 %v41, %v127
    %v129 = vpop.f32.mrb[0].mxu0
    %130 = vmatprep.mubr.f32.mxu0 0.0
    %131 = vmatmul.mubr.f32.gmra.mrb[0].mxu0 %v53
    %v132 = vpop.f32.mrb[0].mxu0
    %v133 = vadd.f32 %v46, %v132
    %v134 = vpop.f32.mrb[0].mxu0
    %135 = vdwg.mxu0
    %vm136 = vcmask 130048
    %v137 = vsel %vm136, %v128, -inf
    %v138 = vsel %vm136, %v133, -inf
    %v139 = vmax.f32 %v137, %v138
    %v140 = vrot.slane %v139, 4
    %v141 = vmax.f32 %v139, %v140
    %v142 = vrot.slane %v141, 2
    %v143 = vmax.f32 %v141, %v142
    %v144 = vrot.slane %v143, 1
    %v145 = vmax.f32 %v143, %v144
    %v146 = vsub.f32 %v128, %v145
    %v147 = vsub.f32 %v133, %v145
    %v148 = vmul.f32 %v146, 1.442695
    %v149 = vpow.pop %v148
    %v150 = vmul.f32 %v147, 1.442695
    %v151 = vpow.pop %v150
    %v152 = vsel %vm136, %v149, 0.0
    %v153 = vsel %vm136, %v151, 0.0
    %v154 = vadd.f32 %v152, %v153
    %v155 = vrot.slane %v154, 4
    %v156 = vadd.f32 %v154, %v155
    %v157 = vrot.slane %v156, 2
    %v158 = vadd.f32 %v156, %v157
    %v159 = vrot.slane %v158, 1
    %v160 = vadd.f32 %v158, %v159
    %v161 = vrcp.pop %v160
    %v162 = vmul.f32 1.0, %v161
    %v163 = vmul.f32 %v149, %v162
    %v164 = vmul.f32 %v151, %v162
    %v165 = vlog2.pop %v160
    %v166 = vmul.f32 %v165, 0.6931472
    %v167 = vsub.f32 %v146, %v166
    %v168 = vsub.f32 %v147, %v166
    %169 = vxpose.xlu0.b32.start [1/16] %v163, 128
    %170 = vxpose.xlu0.b32.cont [2/16] %v164, 128
    %171 = vxpose.xlu0.b32.cont [3/16] 0.0, 128
    %172 = vxpose.xlu0.b32.cont [4/16] 0.0, 128
    %173 = vxpose.xlu0.b32.cont [5/16] 0.0, 128
    %174 = vxpose.xlu0.b32.cont [6/16] 0.0, 128
    %175 = vxpose.xlu0.b32.cont [7/16] 0.0, 128
    %176 = vxpose.xlu0.b32.cont [8/16] 0.0, 128
    %177 = vxpose.xlu0.b32.cont [9/16] 0.0, 128
    %178 = vxpose.xlu0.b32.cont [10/16] 0.0, 128
    %179 = vxpose.xlu0.b32.cont [11/16] 0.0, 128
    %180 = vxpose.xlu0.b32.cont [12/16] 0.0, 128
    %181 = vxpose.xlu0.b32.cont [13/16] 0.0, 128
    %182 = vxpose.xlu0.b32.cont [14/16] 0.0, 128
    %183 = vxpose.xlu0.b32.cont [15/16] 0.0, 128
    %184 = vxpose.xlu0.b32.end [16/16] 0.0, 128
    %v185 = vpop.trf.xlu0
    %v186 = vpop.trf.xlu0
    %v187 = vpop.trf.xlu0
    %v188 = vpop.trf.xlu0
    %v189 = vpop.trf.xlu0
    %v190 = vpop.trf.xlu0
    %v191 = vpop.trf.xlu0
    %v192 = vpop.trf.xlu0
    %v193 = vpop.trf.xlu0
    %v194 = vpop.trf.xlu0
    %v195 = vpop.trf.xlu0
    %v196 = vpop.trf.xlu0
    %v197 = vpop.trf.xlu0
    %v198 = vpop.trf.xlu0
    %v199 = vpop.trf.xlu0
    %v200 = vpop.trf.xlu0
    %201 = vst.msk [vmem:[#allocation5] sm:$0xff] %vm136, %v185
    %202 = vst.msk [vmem:[#allocation5 + $0x8] sm:$0xff] %vm136, %v186
    %203 = vxpose.xlu0.b32.start [1/16] %v167, 128
    %204 = vxpose.xlu0.b32.cont [2/16] %v168, 128
    %205 = vxpose.xlu0.b32.cont [3/16] 0.0, 128
    %206 = vxpose.xlu0.b32.cont [4/16] 0.0, 128
    %207 = vxpose.xlu0.b32.cont [5/16] 0.0, 128
    %208 = vxpose.xlu0.b32.cont [6/16] 0.0, 128
    %209 = vxpose.xlu0.b32.cont [7/16] 0.0, 128
    %210 = vxpose.xlu0.b32.cont [8/16] 0.0, 128
    %211 = vxpose.xlu0.b32.cont [9/16] 0.0, 128
    %212 = vxpose.xlu0.b32.cont [10/16] 0.0, 128
    %213 = vxpose.xlu0.b32.cont [11/16] 0.0, 128
    %214 = vxpose.xlu0.b32.cont [12/16] 0.0, 128
    %215 = vxpose.xlu0.b32.cont [13/16] 0.0, 128
    %216 = vxpose.xlu0.b32.cont [14/16] 0.0, 128
    %217 = vxpose.xlu0.b32.cont [15/16] 0.0, 128
    %218 = vxpose.xlu0.b32.end [16/16] 0.0, 128
    %v219 = vpop.trf.xlu0
    %v220 = vpop.trf.xlu0
    %v221 = vpop.trf.xlu0
    %v222 = vpop.trf.xlu0
    %v223 = vpop.trf.xlu0
    %v224 = vpop.trf.xlu0
    %v225 = vpop.trf.xlu0
    %v226 = vpop.trf.xlu0
    %v227 = vpop.trf.xlu0
    %v228 = vpop.trf.xlu0
    %v229 = vpop.trf.xlu0
    %v230 = vpop.trf.xlu0
    %v231 = vpop.trf.xlu0
    %v232 = vpop.trf.xlu0
    %v233 = vpop.trf.xlu0
    %v234 = vpop.trf.xlu0
    %235 = vst.msk [vmem:[#allocation6] sm:$0xff] %vm136, %v219
    %236 = vst.msk [vmem:[#allocation6 + $0x8] sm:$0xff] %vm136, %v220
    // Predicated region
    $region18: #{tpu_custom_call.1} parent=1 // pred_check
      _
    $region19: #{tpu_custom_call.1} parent=1 // pred_check_branch
      %238 = sbr.rel (0) target = $region21
    $region20: #{tpu_custom_call.1} parent=1 // pred_region
      %s240 = ssub.s32 256, 256
      %241 = vsyncadd [#allocation4], %s240
      %s242 = sshll.u32 [#allocation5], 4
      %s243 = int_to_ptr.vmem [resolvable:$true] %s242
      %248 = dma.vmem_to_hbm [thread:$0]  %s243, 256, %s3, [#allocation4], 128, 128, 8
    $region21: #{tpu_custom_call.1} parent=1 // pred_fallthru
      _
    // Predicated region
    $region22: #{tpu_custom_call.1} parent=1 // pred_check
      _
    $region23: #{tpu_custom_call.1} parent=1 // pred_check_branch
      %250 = sbr.rel (0) target = $region25
    $region24: #{tpu_custom_call.1} parent=1 // pred_region
      %s252 = ssub.s32 256, 256
      %253 = vsyncadd [#allocation7], %s252
      %s254 = sshll.u32 [#allocation6], 4
      %s255 = int_to_ptr.vmem [resolvable:$true] %s254
      %260 = dma.vmem_to_hbm [thread:$0]  %s255, 256, %s4, [#allocation7], 128, 128, 8
    $region25: #{tpu_custom_call.1} parent=1 // pred_fallthru
      _
    // Predicated region
    $region26: #{tpu_custom_call.1} parent=1 // pred_check
      _
    $region27: #{tpu_custom_call.1} parent=1 // pred_check_branch
      %262 = sbr.rel (0) target = $region29
    $region28: #{tpu_custom_call.1} parent=1 // pred_region
      %263 = dma.done [#allocation4], 256
    $region29: #{tpu_custom_call.1} parent=1 // pred_fallthru
      _
    // Predicated region
    $region30: #{tpu_custom_call.1} parent=1 // pred_check
      _
    $region31: #{tpu_custom_call.1} parent=1 // pred_check_branch
      %265 = sbr.rel (0) target = $region33
    $region32: #{tpu_custom_call.1} parent=1 // pred_region
      %266 = dma.done [#allocation7], 256
    $region33: #{tpu_custom_call.1} parent=1 // pred_fallthru
      _
    %267 = vsyncpa [#allocation3], 1
    %268 = vsyncpa [#allocation4], 1
    %269 = vsyncpa [#allocation7], 1

</llo_original>
